<compile_context>
chip_gen: v7x
topology: tpu7x:2x2x1
jax: 0.10.0
libtpu: 0.0.40
codegen_flags: <defaults>
</compile_context>

<pallas_src>
import math
import functools

import jax
import jax.numpy as jnp
from jax.experimental import pallas as pl
from jax.experimental.pallas import tpu as pltpu

_LANE = 128
_LANE_CAP = 2048                 # max packed lane width (multiple of 128)
_TILE_BYTES_CAP = 16 << 20       # max bytes per streamed tile buffer


def _round_up(a, b):
    return ((a + b - 1) // b) * b


@functools.lru_cache(maxsize=None)
def _vmem_limit_bytes():
    """Generation-aware scoped-VMEM budget (3/4 of physical, capped at 96 MiB)."""
    try:
        cap = int(pltpu.get_tpu_info().vmem_capacity_bytes)
    except Exception:
        cap = 64 << 20           # conservative fallback (v7x per-TC VMEM)
    return min((cap * 3) // 4, 96 << 20)


def _plan_lane(total, size, lane_cap=_LANE_CAP):
    """Choose a lane-dense packed layout.

    Returns (lane, padded_total) where lane is a multiple of lcm(size, 128)
    (so mean/std tile correctly across lanes), or (None, None) if no cheap
    lane-dense repack exists (lcm too large) -> caller falls back to (N, size).
    """
    base = size * _LANE // math.gcd(size, _LANE)      # lcm(size, 128)
    if base > lane_cap:
        return None, None
    total_p = _round_up(total, base)                  # minimal (often zero) pad
    lane = base
    for k in range(lane_cap // base, 1, -1):          # widen while it divides
        if total_p % (base * k) == 0:
            lane = base * k
            break
    return lane, total_p


def _pick_tile_rows(n_rows, bytes_per_row, override=None):
    """Row tile (multiple of 8) sized from the VMEM budget, never bigger than
    the (row-rounded) array."""
    if override is not None:
        tr = max(8, _round_up(int(override), 8))
    else:
        budget = min((_vmem_limit_bytes() - (4 << 20)) // 2, _TILE_BYTES_CAP)
        tr = max(8, (budget // max(1, bytes_per_row)) // 8 * 8)
    return max(8, min(tr, _round_up(n_rows, 8)))


def _pack(x2d, lane_cap):
    """Repack (N, size) -> (M, L) lane-dense view; at most ONE flat jnp.pad."""
    n, size = x2d.shape
    total = n * size
    lane, total_p = _plan_lane(total, size, lane_cap)
    if lane is None:
        # TODO(synk): lcm(size,128) too large for a cheap lane-dense repack;
        # fall back to native (N, size) layout (masked lanes if size < 128).
        return x2d, size, 1, False
    flat = x2d.reshape(-1)                            # free (contiguous)
    padded = total_p != total
    if padded:
        flat = jnp.pad(flat, (0, total_p - total))    # single minimal pad, zeros
    return flat.reshape(-1, lane), lane, lane // size, padded


# ----------------------------------------------------------------------------
# Kernel 1: column-wise sum / sum-of-squares reduction (for update()).
# ----------------------------------------------------------------------------
def _colsum_kernel(x_ref, sum_ref, sumsq_ref, *, tile_rows, valid_rows):
    i = pl.program_id(0)

    # Output blocks stay resident across the sequential grid: init at step 0.
    @pl.when(i == 0)
    def _():
        sum_ref[...] = jnp.zeros_like(sum_ref)
        sumsq_ref[...] = jnp.zeros_like(sumsq_ref)

    x = x_ref[...].astype(jnp.float32)                # in-kernel cast

    # Ragged tail block: Pallas OOB rows are unspecified -> mask them to zero.
    # (Static check; full-block grids skip the compare/select entirely.)
    if valid_rows % tile_rows != 0:
        row = i * tile_rows + jax.lax.broadcasted_iota(jnp.int32, x.shape, 0)
        x = jnp.where(row < valid_rows, x, 0.0)

    tr, lane = x.shape
    # Sublane-preserving accumulation: reduction over the leading axis is plain
    # VPU vreg adds; the single cross-sublane reduce happens in the wrapper.
    xr = x.reshape(tr // 8, 8, lane)
    sum_ref[...] += jnp.sum(xr, axis=0)
    sumsq_ref[...] += jnp.sum(xr * xr, axis=0)


def column_stats(x2d, *, tile_rows=None, lane_cap=_LANE_CAP):
    """Column sum and sum-of-squares of a 2-D array; returns two (size,) f32."""
    n, size = x2d.shape
    xp, lane, pack, _ = _pack(x2d, lane_cap)          # zero pad (if any) is exact
    m_rows = xp.shape[0]

    in_bytes = jnp.dtype(x2d.dtype).itemsize
    tr = _pick_tile_rows(m_rows, lane * in_bytes, tile_rows)
    n_tiles = pl.cdiv(m_rows, tr)

    kernel = functools.partial(_colsum_kernel, tile_rows=tr, valid_rows=m_rows)
    sum8, sumsq8 = pl.pallas_call(
        kernel,
        out_shape=(
            jax.ShapeDtypeStruct((8, lane), jnp.float32),
            jax.ShapeDtypeStruct((8, lane), jnp.float32),
        ),
        grid_spec=pltpu.PrefetchScalarGridSpec(
            num_scalar_prefetch=0,
            grid=(n_tiles,),
            in_specs=[pl.BlockSpec((tr, lane), lambda i: (i, 0))],
            out_specs=(
                pl.BlockSpec((8, lane), lambda i: (0, 0)),
                pl.BlockSpec((8, lane), lambda i: (0, 0)),
            ),
        ),
        compiler_params=pltpu.CompilerParams(
            dimension_semantics=("arbitrary",),
            vmem_limit_bytes=_vmem_limit_bytes(),
        ),
    )(xp)

    col_sum = jnp.sum(sum8, axis=0)                   # (lane,) — tiny, outside kernel
    col_sumsq = jnp.sum(sumsq8, axis=0)
    if pack > 1:                                      # fold packed lanes -> features
        col_sum = col_sum.reshape(pack, size).sum(axis=0)
        col_sumsq = col_sumsq.reshape(pack, size).sum(axis=0)
    return col_sum, col_sumsq


# ----------------------------------------------------------------------------
# Kernel 2: element-wise normalization with clipping.
# ----------------------------------------------------------------------------
def _normalize_kernel(x_ref, mean_ref, inv_std_ref, o_ref, *, clip_range):
    x = x_ref[...].astype(jnp.float32)                # in-kernel cast
    v = (x - mean_ref[...]) * inv_std_ref[...]        # multiply, not divide
    if math.isfinite(clip_range):
        v = jnp.clip(v, -clip_range, clip_range)
    o_ref[...] = v.astype(o_ref.dtype)


def normalize2d(x2d, mean, std, *, clip_range, tile_rows=None,
                lane_cap=_LANE_CAP, out_dtype=jnp.float32):
    n, size = x2d.shape
    total = n * size
    xp, lane, pack, padded = _pack(x2d, lane_cap)
    m_rows = xp.shape[0]

    mean = mean.astype(jnp.float32)
    inv_std = 1.0 / std.astype(jnp.float32)           # O(size) divide hoisted
    mean_l = jnp.tile(mean.reshape(1, size), (1, pack))     # (1, lane)
    inv_l = jnp.tile(inv_std.reshape(1, size), (1, pack))   # (1, lane)

    in_b = jnp.dtype(x2d.dtype).itemsize
    out_b = jnp.dtype(out_dtype).itemsize
    tr = _pick_tile_rows(m_rows, lane * (in_b + out_b), tile_rows)
    n_tiles = pl.cdiv(m_rows, tr)

    kernel = functools.partial(_normalize_kernel, clip_range=float(clip_range))
    out = pl.pallas_call(
        kernel,
        out_shape=jax.ShapeDtypeStruct((m_rows, lane), out_dtype),
        grid_spec=pltpu.PrefetchScalarGridSpec(
            num_scalar_prefetch=0,
            grid=(n_tiles,),
            in_specs=[
                pl.BlockSpec((tr, lane), lambda i: (i, 0)),
                pl.BlockSpec((1, lane), lambda i: (0, 0)),
                pl.BlockSpec((1, lane), lambda i: (0, 0)),
            ],
            out_specs=pl.BlockSpec((tr, lane), lambda i: (i, 0)),
        ),
        compiler_params=pltpu.CompilerParams(
            dimension_semantics=("parallel",),
            vmem_limit_bytes=_vmem_limit_bytes(),
        ),
    )(xp, mean_l, inv_l)

    if pack == 1 and not padded:                      # fallback / exact layout
        return out
    out_flat = out.reshape(-1)                        # free (contiguous)
    if padded:
        out_flat = out_flat[:total]                   # single slice (only if padded)
    return out_flat.reshape(n, size)


# ----------------------------------------------------------------------------
# Normalizer (buffers held as Python attributes, mirroring the torch module).
# ----------------------------------------------------------------------------
class Normalizer:
    # TODO(synk): state is mutated Python-side (like the torch buffers); thread
    # it functionally if this ever needs to run under jax.jit.

    def __init__(self, size, eps=1e-8, default_clip_range=math.inf, mean=0.0, std=1.0):
        self.size = size
        self.default_clip_range = default_clip_range
        self.sum = jnp.zeros((size,), jnp.float32)
        self.sumsq = jnp.zeros((size,), jnp.float32)
        self.count = jnp.zeros((1,), jnp.float32)
        self.mean = mean + jnp.zeros((size,), jnp.float32)
        self.std = std * jnp.ones((size,), jnp.float32)
        self.eps = eps * jnp.ones((size,), jnp.float32)
        self.synchronized = True

    def synchronize(self):
        cnt = self.count[0]
        self.mean = self.sum / cnt
        var = jnp.maximum(self.eps ** 2, self.sumsq / cnt - self.mean ** 2)
        self.std = jnp.sqrt(var)
        self.synchronized = True

    def forward(self, x, training=False, tile_rows=None, lane_cap=_LANE_CAP):
        init_shape = x.shape
        x2d = x.reshape(-1, self.size)                # native dtype; cast in-kernel
        if training:
            col_sum, col_sumsq = column_stats(x2d, tile_rows=tile_rows,
                                              lane_cap=lane_cap)
            self.sum = self.sum + col_sum
            self.sumsq = self.sumsq + col_sumsq
            self.count = self.count + x2d.shape[0]
            self.synchronized = False
        if not self.synchronized:
            self.synchronize()
        out2d = normalize2d(x2d, self.mean, self.std,
                            clip_range=self.default_clip_range,
                            tile_rows=tile_rows, lane_cap=lane_cap)
        return out2d.reshape(init_shape)

    __call__ = forward


# ----------------------------------------------------------------------------
# Pure-JAX reference for correctness checking.
# ----------------------------------------------------------------------------
def _reference_forward(x, size, eps, clip_range):
    x2d = x.reshape(-1, size).astype(jnp.float32)
    n = x2d.shape[0]
    mean = x2d.sum(axis=0) / n
    var = jnp.maximum((eps * jnp.ones((size,), jnp.float32)) ** 2,
                      (x2d ** 2).sum(axis=0) / n - mean ** 2)
    std = jnp.sqrt(var)
    out = (x2d - mean[None, :]) / std[None, :]
    if math.isfinite(clip_range):
        out = jnp.clip(out, -clip_range, clip_range)
    return out.reshape(x.shape)


if __name__ == "__main__":
    size = 32
    key = jax.random.PRNGKey(0)
    k1, k2, k3, k4 = jax.random.split(key, 4)

    # Case 1: (4, 16, 32) -> 2048 elements packed to one (1, 2048) lane-dense
    # row; zero pads, zero output slices, default (large) tiles.
    x = jax.random.normal(k1, (4, 16, size), dtype=jnp.float32) * 3.0 + 1.5
    norm = Normalizer(size, eps=1e-8, default_clip_range=5.0)
    out = jax.block_until_ready(norm.forward(x, training=True))
    ref = _reference_forward(x, size, 1e-8, 5.0)
    assert out.shape == x.shape
    assert jnp.allclose(out, ref, atol=1e-5, rtol=1e-5), "train-mode mismatch"

    # Eval-mode call reuses the synchronized mean/std.
    out_eval = jax.block_until_ready(norm.forward(x, training=False))
    assert jnp.allclose(out_eval, ref, atol=1e-5, rtol=1e-5), "eval-mode mismatch"

    # Case 2: multi-block accumulation + ragged-tail masking (80 rows packed to
    # (20, 128) with lane_cap=128, tile_rows=8 -> 3 grid steps, masked tail).
    x2 = jax.random.normal(k2, (5, 16, size), dtype=jnp.float32) * 0.7 - 0.3
    norm2 = Normalizer(size, eps=1e-8, default_clip_range=5.0)
    out2 = jax.block_until_ready(norm2.forward(x2, training=True,
                                               tile_rows=8, lane_cap=128))
    ref2 = _reference_forward(x2, size, 1e-8, 5.0)
    assert jnp.allclose(out2, ref2, atol=1e-5, rtol=1e-5), "multi-tile mismatch"

    # Case 3: ragged element count (63 rows) -> single minimal flat pad + one
    # output slice; no clipping.
    x3 = jax.random.normal(k3, (7, 9, size), dtype=jnp.float32) * 2.0 + 0.25
    norm3 = Normalizer(size, eps=1e-8, default_clip_range=math.inf)
    out3 = jax.block_until_ready(norm3.forward(x3, training=True))
    ref3 = _reference_forward(x3, size, 1e-8, math.inf)
    assert jnp.allclose(out3, ref3, atol=1e-5, rtol=1e-5), "ragged mismatch"

    # Case 4: feature size 48 (128 % 48 != 0) -> lane-dense via lcm(48,128)=384.
    x4 = jax.random.normal(k4, (4, 8, 48), dtype=jnp.float32) * 1.3 + 0.1
    norm4 = Normalizer(48, eps=1e-8, default_clip_range=3.0)
    out4 = jax.block_until_ready(norm4.forward(x4, training=True))
    ref4 = _reference_forward(x4, 48, 1e-8, 3.0)
    assert jnp.allclose(out4, ref4, atol=1e-5, rtol=1e-5), "lcm-lane mismatch"

    print("KERNEL_OK")
</pallas_src>

<mosaic_0001>
module attributes {stable_mosaic.version = 11 : i64} {
  func.func @_colsum_kernel(%arg0: i32, %arg1: memref<8x2048xf32, #tpu.memory_space<vmem>>, %arg2: memref<8x2048xf32, #tpu.memory_space<vmem>>, %arg3: memref<8x2048xf32, #tpu.memory_space<vmem>>) attributes {dimension_semantics = [#tpu.dimension_semantics<arbitrary>], iteration_bounds = array<i64: 1>, scalar_prefetch = 0 : i64, scratch_operands = 0 : i64, tpu.core_type = #tpu.core_type<tc>, window_params = [{transform_indices = @transform_0, window_bounds = array<i64: 8, 2048>}, {pipeline_mode = #tpu.pipeline_mode<synchronous>, transform_indices = @transform_1, window_bounds = array<i64: 8, 2048>}, {pipeline_mode = #tpu.pipeline_mode<synchronous>, transform_indices = @transform_2, window_bounds = array<i64: 8, 2048>}]} {
    %c0_i32 = arith.constant 0 : i32
    %0 = arith.cmpi eq, %arg0, %c0_i32 : i32
    %1 = arith.extui %0 : i1 to i32
    %c0_i32_0 = arith.constant 0 : i32
    %2 = arith.cmpi ne, %1, %c0_i32_0 : i32
    scf.if %2 {
      %cst_12 = arith.constant 0.000000e+00 : f32
      %22 = vector.broadcast %cst_12 : f32 to vector<8x2048xf32>
      %c0_13 = arith.constant 0 : index
      %c0_14 = arith.constant 0 : index
      %23 = vector.load %arg2[%c0_13, %c0_14] : memref<8x2048xf32, #tpu.memory_space<vmem>>, vector<8x2048xf32>
      tpu.vector_store %arg2[%c0_13, %c0_14], %22 {strides = array<i32>} : memref<8x2048xf32, #tpu.memory_space<vmem>>, vector<8x2048xf32>,
      %cst_15 = arith.constant 0.000000e+00 : f32
      %24 = vector.broadcast %cst_15 : f32 to vector<8x2048xf32>
      %c0_16 = arith.constant 0 : index
      %c0_17 = arith.constant 0 : index
      %25 = vector.load %arg3[%c0_16, %c0_17] : memref<8x2048xf32, #tpu.memory_space<vmem>>, vector<8x2048xf32>
      tpu.vector_store %arg3[%c0_16, %c0_17], %24 {strides = array<i32>} : memref<8x2048xf32, #tpu.memory_space<vmem>>, vector<8x2048xf32>,
    } else {
    }
    %c0 = arith.constant 0 : index
    %c0_1 = arith.constant 0 : index
    %3 = vector.load %arg1[%c0, %c0_1] : memref<8x2048xf32, #tpu.memory_space<vmem>>, vector<8x2048xf32>
    %c8_i32 = arith.constant 8 : i32
    %4 = arith.muli %arg0, %c8_i32 : i32
    %5 = tpu.iota {dimensions = array<i32: 0>} : vector<8x2048xi32>
    %6 = vector.broadcast %4 : i32 to vector<8x2048xi32>
    %7 = arith.addi %6, %5 : vector<8x2048xi32>
    %c1_i32 = arith.constant 1 : i32
    %8 = vector.broadcast %c1_i32 : i32 to vector<8x2048xi32>
    %9 = arith.cmpi slt, %7, %8 : vector<8x2048xi32>
    %cst = arith.constant 0.000000e+00 : f32
    %10 = vector.broadcast %cst : f32 to vector<8x2048xf32>
    %11 = arith.select %9, %3, %10 : vector<8x2048xi1>, vector<8x2048xf32>
    %12 = vector.shape_cast %11 : vector<8x2048xf32> to vector<1x8x2048xf32>
    %c0_2 = arith.constant 0 : index
    %c0_3 = arith.constant 0 : index
    %13 = vector.load %arg2[%c0_2, %c0_3] : memref<8x2048xf32, #tpu.memory_space<vmem>>, vector<8x2048xf32>
    %cst_4 = arith.constant dense<0.000000e+00> : vector<8x2048xf32>
    %14 = vector.multi_reduction <add>, %12, %cst_4 [0] : vector<1x8x2048xf32> to vector<8x2048xf32>
    %15 = arith.addf %13, %14 : vector<8x2048xf32>
    %c0_5 = arith.constant 0 : index
    %c0_6 = arith.constant 0 : index
    %16 = vector.load %arg2[%c0_5, %c0_6] : memref<8x2048xf32, #tpu.memory_space<vmem>>, vector<8x2048xf32>
    tpu.vector_store %arg2[%c0_5, %c0_6], %15 {strides = array<i32>} : memref<8x2048xf32, #tpu.memory_space<vmem>>, vector<8x2048xf32>,
    %c0_7 = arith.constant 0 : index
    %c0_8 = arith.constant 0 : index
    %17 = vector.load %arg3[%c0_7, %c0_8] : memref<8x2048xf32, #tpu.memory_space<vmem>>, vector<8x2048xf32>
    %18 = arith.mulf %12, %12 : vector<1x8x2048xf32>
    %cst_9 = arith.constant dense<0.000000e+00> : vector<8x2048xf32>
    %19 = vector.multi_reduction <add>, %18, %cst_9 [0] : vector<1x8x2048xf32> to vector<8x2048xf32>
    %20 = arith.addf %17, %19 : vector<8x2048xf32>
    %c0_10 = arith.constant 0 : index
    %c0_11 = arith.constant 0 : index
    %21 = vector.load %arg3[%c0_10, %c0_11] : memref<8x2048xf32, #tpu.memory_space<vmem>>, vector<8x2048xf32>
    tpu.vector_store %arg3[%c0_10, %c0_11], %20 {strides = array<i32>} : memref<8x2048xf32, #tpu.memory_space<vmem>>, vector<8x2048xf32>,
    return
  }
  func.func @transform_0(%arg0: i32) -> (i32, i32) {
    %c0_i32 = arith.constant 0 : i32
    %c0_i32_0 = arith.constant 0 : i32
    return %arg0, %c0_i32 : i32, i32
  }
  func.func @transform_1(%arg0: i32) -> (i32, i32) {
    %c0_i32 = arith.constant 0 : i32
    %c0_i32_0 = arith.constant 0 : i32
    %c0_i32_1 = arith.constant 0 : i32
    return %c0_i32, %c0_i32_0 : i32, i32
  }
  func.func @transform_2(%arg0: i32) -> (i32, i32) {
    %c0_i32 = arith.constant 0 : i32
    %c0_i32_0 = arith.constant 0 : i32
    %c0_i32_1 = arith.constant 0 : i32
    return %c0_i32, %c0_i32_0 : i32, i32
  }
}

</mosaic_0001>

<llo_original>
// kernel: tpu_custom_call.1
$region0: #{tpu_custom_call.1}
  #allocation0 [shape = 'u32[]', space=smem, size = 0x4, offset = 0x4, fixed_abs, tag = 'smem constant byte address 0x4 - core index']
  #allocation1 [shape = 'u32[144,128]{1,0:T(1,128)}', space=vmem, size = 0x12000, scoped, tag = 'internal scratch']
  %s0 = inlined_call_operand.hbm [shape: f32[1,2048], index: 0, kind: input, shape index: {}]
  %s1 = inlined_call_operand.hbm [shape: f32[8,2048], index: 1, kind: output, shape index: {0}]
  %s2 = inlined_call_operand.hbm [shape: f32[8,2048], index: 2, kind: output, shape index: {1}]
  %3 = xla_tuple %s1, %s2
  %s4 = sld [smem:[#allocation0]]
  $region30: #{tpu_custom_call.1} parent=0
    _
  %s6 = ssub.s32 1, %s4
  %s7 = scalar_select 0, %s6, %s4
  $region1: #{tpu_custom_call.1} parent=0
    #allocation2 [shape = 'u8[65536]{0}', space=vmem, size = 0x10000, scoped, tag = 'input window, operand 0, single buffered']
    #allocation3 [shape = 's32[1]{0}', space=sflag, size = 0x4, scoped, tag = 'scoped memory for tpu_custom_call.1']
    #allocation4 [shape = 's32[1]{0}', space=sflag, size = 0x4, scoped, tag = 'scoped memory for tpu_custom_call.1']
    #allocation5 [shape = 'u8[65536]{0}', space=vmem, size = 0x10000, scoped, tag = 'output window, operand 0, single buffered']
    #allocation6 [shape = 'u8[65536]{0}', space=vmem, size = 0x10000, scoped, tag = 'output window, operand 1, single buffered']
    #allocation7 [shape = 's32[1]{0}', space=sflag, size = 0x4, scoped, tag = 'scoped memory for tpu_custom_call.1']
    %8 = vsyncpa [#allocation3], 0
    %9 = vsyncpa [#allocation4], 0
    %10 = vsyncpa [#allocation7], 0
    // Predicated region
    $region2: #{tpu_custom_call.1} parent=1 // pred_check
      _
    $region3: #{tpu_custom_call.1} parent=1 // pred_check_branch
      %12 = sbr.rel (0) target = $region5
    $region4: #{tpu_custom_call.1} parent=1 // pred_region
      %s14 = ssub.s32 2048, 256
      %15 = vsyncadd [#allocation3], %s14
      %s16 = sshll.u32 [#allocation2], 4
      %s17 = int_to_ptr.vmem [resolvable:$true] %s16
      %22 = dma.hbm_to_vmem [thread:$0]  %s0, 256, %s17, [#allocation3], 256, 256, 16
    $region5: #{tpu_custom_call.1} parent=1 // pred_fallthru
      _
    // Predicated region
    $region6: #{tpu_custom_call.1} parent=1 // pred_check
      _
    $region7: #{tpu_custom_call.1} parent=1 // pred_check_branch
      %24 = sbr.rel (0) target = $region9
    $region8: #{tpu_custom_call.1} parent=1 // pred_region
      %25 = dma.done [#allocation3], 2048
    $region9: #{tpu_custom_call.1} parent=1 // pred_fallthru
      _
    %p26 = scmp.eq.s32.totalorder 0, 0
    // Predicated region
    $region10: #{tpu_custom_call.1} parent=1 // pred_check
      %p27 = pneg %p26
    $region11: #{tpu_custom_call.1} parent=1 // pred_check_branch
      %29 = sbr.rel (%p27) target = $region13
    $region12: #{tpu_custom_call.1} parent=1 // pred_region
      %30 = vst [vmem:[#allocation5] sm:$0xff] 0.0
      %31 = vst [vmem:[#allocation5 + $0x8] sm:$0xff] 0.0
      %32 = vst [vmem:[#allocation5 + $0x10] sm:$0xff] 0.0
      %33 = vst [vmem:[#allocation5 + $0x18] sm:$0xff] 0.0
      %34 = vst [vmem:[#allocation5 + $0x20] sm:$0xff] 0.0
      %35 = vst [vmem:[#allocation5 + $0x28] sm:$0xff] 0.0
      %36 = vst [vmem:[#allocation5 + $0x30] sm:$0xff] 0.0
      %37 = vst [vmem:[#allocation5 + $0x38] sm:$0xff] 0.0
      %38 = vst [vmem:[#allocation5 + $0x40] sm:$0xff] 0.0
      %39 = vst [vmem:[#allocation5 + $0x48] sm:$0xff] 0.0
      %40 = vst [vmem:[#allocation5 + $0x50] sm:$0xff] 0.0
      %41 = vst [vmem:[#allocation5 + $0x58] sm:$0xff] 0.0
      %42 = vst [vmem:[#allocation5 + $0x60] sm:$0xff] 0.0
      %43 = vst [vmem:[#allocation5 + $0x68] sm:$0xff] 0.0
      %44 = vst [vmem:[#allocation5 + $0x70] sm:$0xff] 0.0
      %45 = vst [vmem:[#allocation5 + $0x78] sm:$0xff] 0.0
      %46 = vst [vmem:[#allocation6] sm:$0xff] 0.0
      %47 = vst [vmem:[#allocation6 + $0x8] sm:$0xff] 0.0
      %48 = vst [vmem:[#allocation6 + $0x10] sm:$0xff] 0.0
      %49 = vst [vmem:[#allocation6 + $0x18] sm:$0xff] 0.0
      %50 = vst [vmem:[#allocation6 + $0x20] sm:$0xff] 0.0
      %51 = vst [vmem:[#allocation6 + $0x28] sm:$0xff] 0.0
      %52 = vst [vmem:[#allocation6 + $0x30] sm:$0xff] 0.0
      %53 = vst [vmem:[#allocation6 + $0x38] sm:$0xff] 0.0
      %54 = vst [vmem:[#allocation6 + $0x40] sm:$0xff] 0.0
      %55 = vst [vmem:[#allocation6 + $0x48] sm:$0xff] 0.0
      %56 = vst [vmem:[#allocation6 + $0x50] sm:$0xff] 0.0
      %57 = vst [vmem:[#allocation6 + $0x58] sm:$0xff] 0.0
      %58 = vst [vmem:[#allocation6 + $0x60] sm:$0xff] 0.0
      %59 = vst [vmem:[#allocation6 + $0x68] sm:$0xff] 0.0
      %60 = vst [vmem:[#allocation6 + $0x70] sm:$0xff] 0.0
      %61 = vst [vmem:[#allocation6 + $0x78] sm:$0xff] 0.0
    $region13: #{tpu_custom_call.1} parent=1 // pred_fallthru
      _
    %v62 = vld [vmem:[#allocation2] sm:$0xff]
    %v63 = vld [vmem:[#allocation2 + $0x8] sm:$0xff]
    %v64 = vld [vmem:[#allocation2 + $0x10] sm:$0xff]
    %v65 = vld [vmem:[#allocation2 + $0x18] sm:$0xff]
    %v66 = vld [vmem:[#allocation2 + $0x20] sm:$0xff]
    %v67 = vld [vmem:[#allocation2 + $0x28] sm:$0xff]
    %v68 = vld [vmem:[#allocation2 + $0x30] sm:$0xff]
    %v69 = vld [vmem:[#allocation2 + $0x38] sm:$0xff]
    %v70 = vld [vmem:[#allocation2 + $0x40] sm:$0xff]
    %v71 = vld [vmem:[#allocation2 + $0x48] sm:$0xff]
    %v72 = vld [vmem:[#allocation2 + $0x50] sm:$0xff]
    %v73 = vld [vmem:[#allocation2 + $0x58] sm:$0xff]
    %v74 = vld [vmem:[#allocation2 + $0x60] sm:$0xff]
    %v75 = vld [vmem:[#allocation2 + $0x68] sm:$0xff]
    %v76 = vld [vmem:[#allocation2 + $0x70] sm:$0xff]
    %v77 = vld [vmem:[#allocation2 + $0x78] sm:$0xff]
    %s78 = smul.u32 0, 8
    %v79 = vlaneseq
    %v80 = vshrl.u32 %v79, 7
    %v81 = vstv %s78
    %v82 = vadd.s32 %v81, %v80
    %vm83 = vcmp.lt.s32.totalorder %v82, 1
    %v100 = vcombine.low %v62, %v64
    %v101 = vcombine.high %v62, %v64
    %v102 = vcombine.low %v66, %v68
    %v103 = vcombine.high %v66, %v68
    %v104 = vcombine.low %v70, %v72
    %v105 = vcombine.high %v70, %v72
    %v106 = vcombine.low %v74, %v76
    %v107 = vcombine.high %v74, %v76
    %v109 = vunpack.c.l.s4 1966171168
    %v110 = vunpack.c.0.s8 %v109
    %v111 = vlaneseq
    %v112 = vshrl.u32 %v111, 7
    %v113 = vsub.s32 %v110, %v112
    %v114 = vrot.slane %v100, %v113
    %v116 = vunpack.c.l.s4 1966171168
    %v117 = vunpack.c.0.s8 %v116
    %v118 = vlaneseq
    %v119 = vshrl.u32 %v118, 7
    %v120 = vsub.s32 %v117, %v119
    %v121 = vrot.slane %v101, %v120
    %v123 = vunpack.c.l.s4 1966171168
    %v124 = vunpack.c.0.s8 %v123
    %v125 = vlaneseq
    %v126 = vshrl.u32 %v125, 7
    %v127 = vsub.s32 %v124, %v126
    %v128 = vrot.slane %v102, %v127
    %v130 = vunpack.c.l.s4 1966171168
    %v131 = vunpack.c.0.s8 %v130
    %v132 = vlaneseq
    %v133 = vshrl.u32 %v132, 7
    %v134 = vsub.s32 %v131, %v133
    %v135 = vrot.slane %v103, %v134
    %v137 = vunpack.c.l.s4 1966171168
    %v138 = vunpack.c.0.s8 %v137
    %v139 = vlaneseq
    %v140 = vshrl.u32 %v139, 7
    %v141 = vsub.s32 %v138, %v140
    %v142 = vrot.slane %v104, %v141
    %v144 = vunpack.c.l.s4 1966171168
    %v145 = vunpack.c.0.s8 %v144
    %v146 = vlaneseq
    %v147 = vshrl.u32 %v146, 7
    %v148 = vsub.s32 %v145, %v147
    %v149 = vrot.slane %v105, %v148
    %v151 = vunpack.c.l.s4 1966171168
    %v152 = vunpack.c.0.s8 %v151
    %v153 = vlaneseq
    %v154 = vshrl.u32 %v153, 7
    %v155 = vsub.s32 %v152, %v154
    %v156 = vrot.slane %v106, %v155
    %v158 = vunpack.c.l.s4 1966171168
    %v159 = vunpack.c.0.s8 %v158
    %v160 = vlaneseq
    %v161 = vshrl.u32 %v160, 7
    %v162 = vsub.s32 %v159, %v161
    %v163 = vrot.slane %v107, %v162
    %v164 = vcombine.low %v114, %v128
    %v165 = vcombine.high %v114, %v128
    %v166 = vcombine.low %v121, %v135
    %v167 = vcombine.high %v121, %v135
    %v168 = vcombine.low %v142, %v156
    %v169 = vcombine.high %v142, %v156
    %v170 = vcombine.low %v149, %v163
    %v171 = vcombine.high %v149, %v163
    %v173 = vunpack.c.l.s4 1966171168
    %v174 = vunpack.c.0.s8 %v173
    %v175 = vlaneseq
    %v176 = vshrl.u32 %v175, 7
    %v177 = vsub.s32 %v174, %v176
    %v178 = vrot.slane %v164, %v177
    %v180 = vunpack.c.l.s4 1966171168
    %v181 = vunpack.c.0.s8 %v180
    %v182 = vlaneseq
    %v183 = vshrl.u32 %v182, 7
    %v184 = vsub.s32 %v181, %v183
    %v185 = vrot.slane %v166, %v184
    %v187 = vunpack.c.l.s4 1966171168
    %v188 = vunpack.c.0.s8 %v187
    %v189 = vlaneseq
    %v190 = vshrl.u32 %v189, 7
    %v191 = vsub.s32 %v188, %v190
    %v192 = vrot.slane %v165, %v191
    %v194 = vunpack.c.l.s4 1966171168
    %v195 = vunpack.c.0.s8 %v194
    %v196 = vlaneseq
    %v197 = vshrl.u32 %v196, 7
    %v198 = vsub.s32 %v195, %v197
    %v199 = vrot.slane %v167, %v198
    %v201 = vunpack.c.l.s4 1966171168
    %v202 = vunpack.c.0.s8 %v201
    %v203 = vlaneseq
    %v204 = vshrl.u32 %v203, 7
    %v205 = vsub.s32 %v202, %v204
    %v206 = vrot.slane %v168, %v205
    %v208 = vunpack.c.l.s4 1966171168
    %v209 = vunpack.c.0.s8 %v208
    %v210 = vlaneseq
    %v211 = vshrl.u32 %v210, 7
    %v212 = vsub.s32 %v209, %v211
    %v213 = vrot.slane %v170, %v212
    %v215 = vunpack.c.l.s4 1966171168
    %v216 = vunpack.c.0.s8 %v215
    %v217 = vlaneseq
    %v218 = vshrl.u32 %v217, 7
    %v219 = vsub.s32 %v216, %v218
    %v220 = vrot.slane %v169, %v219
    %v222 = vunpack.c.l.s4 1966171168
    %v223 = vunpack.c.0.s8 %v222
    %v224 = vlaneseq
    %v225 = vshrl.u32 %v224, 7
    %v226 = vsub.s32 %v223, %v225
    %v227 = vrot.slane %v171, %v226
    %v228 = vcombine.low %v178, %v206
    %v229 = vcombine.high %v178, %v206
    %v230 = vcombine.low %v185, %v213
    %v231 = vcombine.high %v185, %v213
    %v232 = vcombine.low %v192, %v220
    %v233 = vcombine.high %v192, %v220
    %v234 = vcombine.low %v199, %v227
    %v235 = vcombine.high %v199, %v227
    %v236 = vcombine.low %v63, %v65
    %v237 = vcombine.high %v63, %v65
    %v238 = vcombine.low %v67, %v69
    %v239 = vcombine.high %v67, %v69
    %v240 = vcombine.low %v71, %v73
    %v241 = vcombine.high %v71, %v73
    %v242 = vcombine.low %v75, %v77
    %v243 = vcombine.high %v75, %v77
    %v245 = vunpack.c.l.s4 1966171168
    %v246 = vunpack.c.0.s8 %v245
    %v247 = vlaneseq
    %v248 = vshrl.u32 %v247, 7
    %v249 = vsub.s32 %v246, %v248
    %v250 = vrot.slane %v236, %v249
    %v252 = vunpack.c.l.s4 1966171168
    %v253 = vunpack.c.0.s8 %v252
    %v254 = vlaneseq
    %v255 = vshrl.u32 %v254, 7
    %v256 = vsub.s32 %v253, %v255
    %v257 = vrot.slane %v237, %v256
    %v259 = vunpack.c.l.s4 1966171168
    %v260 = vunpack.c.0.s8 %v259
    %v261 = vlaneseq
    %v262 = vshrl.u32 %v261, 7
    %v263 = vsub.s32 %v260, %v262
    %v264 = vrot.slane %v238, %v263
    %v266 = vunpack.c.l.s4 1966171168
    %v267 = vunpack.c.0.s8 %v266
    %v268 = vlaneseq
    %v269 = vshrl.u32 %v268, 7
    %v270 = vsub.s32 %v267, %v269
    %v271 = vrot.slane %v239, %v270
    %v273 = vunpack.c.l.s4 1966171168
    %v274 = vunpack.c.0.s8 %v273
    %v275 = vlaneseq
    %v276 = vshrl.u32 %v275, 7
    %v277 = vsub.s32 %v274, %v276
    %v278 = vrot.slane %v240, %v277
    %v280 = vunpack.c.l.s4 1966171168
    %v281 = vunpack.c.0.s8 %v280
    %v282 = vlaneseq
    %v283 = vshrl.u32 %v282, 7
    %v284 = vsub.s32 %v281, %v283
    %v285 = vrot.slane %v241, %v284
    %v287 = vunpack.c.l.s4 1966171168
    %v288 = vunpack.c.0.s8 %v287
    %v289 = vlaneseq
    %v290 = vshrl.u32 %v289, 7
    %v291 = vsub.s32 %v288, %v290
    %v292 = vrot.slane %v242, %v291
    %v294 = vunpack.c.l.s4 1966171168
    %v295 = vunpack.c.0.s8 %v294
    %v296 = vlaneseq
    %v297 = vshrl.u32 %v296, 7
    %v298 = vsub.s32 %v295, %v297
    %v299 = vrot.slane %v243, %v298
    %v300 = vcombine.low %v250, %v264
    %v301 = vcombine.high %v250, %v264
    %v302 = vcombine.low %v257, %v271
    %v303 = vcombine.high %v257, %v271
    %v304 = vcombine.low %v278, %v292
    %v305 = vcombine.high %v278, %v292
    %v306 = vcombine.low %v285, %v299
    %v307 = vcombine.high %v285, %v299
    %v309 = vunpack.c.l.s4 1966171168
    %v310 = vunpack.c.0.s8 %v309
    %v311 = vlaneseq
    %v312 = vshrl.u32 %v311, 7
    %v313 = vsub.s32 %v310, %v312
    %v314 = vrot.slane %v300, %v313
    %v316 = vunpack.c.l.s4 1966171168
    %v317 = vunpack.c.0.s8 %v316
    %v318 = vlaneseq
    %v319 = vshrl.u32 %v318, 7
    %v320 = vsub.s32 %v317, %v319
    %v321 = vrot.slane %v302, %v320
    %v323 = vunpack.c.l.s4 1966171168
    %v324 = vunpack.c.0.s8 %v323
    %v325 = vlaneseq
    %v326 = vshrl.u32 %v325, 7
    %v327 = vsub.s32 %v324, %v326
    %v328 = vrot.slane %v301, %v327
    %v330 = vunpack.c.l.s4 1966171168
    %v331 = vunpack.c.0.s8 %v330
    %v332 = vlaneseq
    %v333 = vshrl.u32 %v332, 7
    %v334 = vsub.s32 %v331, %v333
    %v335 = vrot.slane %v303, %v334
    %v337 = vunpack.c.l.s4 1966171168
    %v338 = vunpack.c.0.s8 %v337
    %v339 = vlaneseq
    %v340 = vshrl.u32 %v339, 7
    %v341 = vsub.s32 %v338, %v340
    %v342 = vrot.slane %v304, %v341
    %v344 = vunpack.c.l.s4 1966171168
    %v345 = vunpack.c.0.s8 %v344
    %v346 = vlaneseq
    %v347 = vshrl.u32 %v346, 7
    %v348 = vsub.s32 %v345, %v347
    %v349 = vrot.slane %v306, %v348
    %v351 = vunpack.c.l.s4 1966171168
    %v352 = vunpack.c.0.s8 %v351
    %v353 = vlaneseq
    %v354 = vshrl.u32 %v353, 7
    %v355 = vsub.s32 %v352, %v354
    %v356 = vrot.slane %v305, %v355
    %v358 = vunpack.c.l.s4 1966171168
    %v359 = vunpack.c.0.s8 %v358
    %v360 = vlaneseq
    %v361 = vshrl.u32 %v360, 7
    %v362 = vsub.s32 %v359, %v361
    %v363 = vrot.slane %v307, %v362
    %v364 = vcombine.low %v314, %v342
    %v365 = vcombine.high %v314, %v342
    %v366 = vcombine.low %v321, %v349
    %v367 = vcombine.high %v321, %v349
    %v368 = vcombine.low %v328, %v356
    %v369 = vcombine.high %v328, %v356
    %v370 = vcombine.low %v335, %v363
    %v371 = vcombine.high %v335, %v363
    %v388 = vsel %vm83, %v228, 0.0
    %v389 = vsel %vm83, %v232, 0.0
    %v390 = vsel %vm83, %v229, 0.0
    %v391 = vsel %vm83, %v233, 0.0
    %v392 = vsel %vm83, %v230, 0.0
    %v393 = vsel %vm83, %v234, 0.0
    %v394 = vsel %vm83, %v231, 0.0
    %v395 = vsel %vm83, %v235, 0.0
    %v396 = vsel %vm83, %v364, 0.0
    %v397 = vsel %vm83, %v368, 0.0
    %v398 = vsel %vm83, %v365, 0.0
    %v399 = vsel %vm83, %v369, 0.0
    %v400 = vsel %vm83, %v366, 0.0
    %v401 = vsel %vm83, %v370, 0.0
    %v402 = vsel %vm83, %v367, 0.0
    %v403 = vsel %vm83, %v371, 0.0
    %v404 = vld [vmem:[#allocation5] sm:$0xff]
    %v405 = vld [vmem:[#allocation5 + $0x8] sm:$0xff]
    %v406 = vld [vmem:[#allocation5 + $0x10] sm:$0xff]
    %v407 = vld [vmem:[#allocation5 + $0x18] sm:$0xff]
    %v408 = vld [vmem:[#allocation5 + $0x20] sm:$0xff]
    %v409 = vld [vmem:[#allocation5 + $0x28] sm:$0xff]
    %v410 = vld [vmem:[#allocation5 + $0x30] sm:$0xff]
    %v411 = vld [vmem:[#allocation5 + $0x38] sm:$0xff]
    %v412 = vld [vmem:[#allocation5 + $0x40] sm:$0xff]
    %v413 = vld [vmem:[#allocation5 + $0x48] sm:$0xff]
    %v414 = vld [vmem:[#allocation5 + $0x50] sm:$0xff]
    %v415 = vld [vmem:[#allocation5 + $0x58] sm:$0xff]
    %v416 = vld [vmem:[#allocation5 + $0x60] sm:$0xff]
    %v417 = vld [vmem:[#allocation5 + $0x68] sm:$0xff]
    %v418 = vld [vmem:[#allocation5 + $0x70] sm:$0xff]
    %v419 = vld [vmem:[#allocation5 + $0x78] sm:$0xff]
    %v420 = vadd.f32 %v388, 0.0
    %v421 = vadd.f32 %v389, 0.0
    %v422 = vadd.f32 %v390, 0.0
    %v423 = vadd.f32 %v391, 0.0
    %v424 = vadd.f32 %v392, 0.0
    %v425 = vadd.f32 %v393, 0.0
    %v426 = vadd.f32 %v394, 0.0
    %v427 = vadd.f32 %v395, 0.0
    %v428 = vadd.f32 %v396, 0.0
    %v429 = vadd.f32 %v397, 0.0
    %v430 = vadd.f32 %v398, 0.0
    %v431 = vadd.f32 %v399, 0.0
    %v432 = vadd.f32 %v400, 0.0
    %v433 = vadd.f32 %v401, 0.0
    %v434 = vadd.f32 %v402, 0.0
    %v435 = vadd.f32 %v403, 0.0
    %v436 = vadd.f32 %v404, %v420
    %v437 = vadd.f32 %v405, %v421
    %v438 = vadd.f32 %v406, %v422
    %v439 = vadd.f32 %v407, %v423
    %v440 = vadd.f32 %v408, %v424
    %v441 = vadd.f32 %v409, %v425
    %v442 = vadd.f32 %v410, %v426
    %v443 = vadd.f32 %v411, %v427
    %v444 = vadd.f32 %v412, %v428
    %v445 = vadd.f32 %v413, %v429
    %v446 = vadd.f32 %v414, %v430
    %v447 = vadd.f32 %v415, %v431
    %v448 = vadd.f32 %v416, %v432
    %v449 = vadd.f32 %v417, %v433
    %v450 = vadd.f32 %v418, %v434
    %v451 = vadd.f32 %v419, %v435
    %452 = vst [vmem:[#allocation5] sm:$0xff] %v436
    %453 = vst [vmem:[#allocation5 + $0x8] sm:$0xff] %v437
    %454 = vst [vmem:[#allocation5 + $0x10] sm:$0xff] %v438
    %455 = vst [vmem:[#allocation5 + $0x18] sm:$0xff] %v439
    %456 = vst [vmem:[#allocation5 + $0x20] sm:$0xff] %v440
    %457 = vst [vmem:[#allocation5 + $0x28] sm:$0xff] %v441
    %458 = vst [vmem:[#allocation5 + $0x30] sm:$0xff] %v442
    %459 = vst [vmem:[#allocation5 + $0x38] sm:$0xff] %v443
    %460 = vst [vmem:[#allocation5 + $0x40] sm:$0xff] %v444
    %461 = vst [vmem:[#allocation5 + $0x48] sm:$0xff] %v445
    %462 = vst [vmem:[#allocation5 + $0x50] sm:$0xff] %v446
    %463 = vst [vmem:[#allocation5 + $0x58] sm:$0xff] %v447
    %464 = vst [vmem:[#allocation5 + $0x60] sm:$0xff] %v448
    %465 = vst [vmem:[#allocation5 + $0x68] sm:$0xff] %v449
    %466 = vst [vmem:[#allocation5 + $0x70] sm:$0xff] %v450
    %467 = vst [vmem:[#allocation5 + $0x78] sm:$0xff] %v451
    %v468 = vld [vmem:[#allocation6] sm:$0xff]
    %v469 = vld [vmem:[#allocation6 + $0x8] sm:$0xff]
    %v470 = vld [vmem:[#allocation6 + $0x10] sm:$0xff]
    %v471 = vld [vmem:[#allocation6 + $0x18] sm:$0xff]
    %v472 = vld [vmem:[#allocation6 + $0x20] sm:$0xff]
    %v473 = vld [vmem:[#allocation6 + $0x28] sm:$0xff]
    %v474 = vld [vmem:[#allocation6 + $0x30] sm:$0xff]
    %v475 = vld [vmem:[#allocation6 + $0x38] sm:$0xff]
    %v476 = vld [vmem:[#allocation6 + $0x40] sm:$0xff]
    %v477 = vld [vmem:[#allocation6 + $0x48] sm:$0xff]
    %v478 = vld [vmem:[#allocation6 + $0x50] sm:$0xff]
    %v479 = vld [vmem:[#allocation6 + $0x58] sm:$0xff]
    %v480 = vld [vmem:[#allocation6 + $0x60] sm:$0xff]
    %v481 = vld [vmem:[#allocation6 + $0x68] sm:$0xff]
    %v482 = vld [vmem:[#allocation6 + $0x70] sm:$0xff]
    %v483 = vld [vmem:[#allocation6 + $0x78] sm:$0xff]
    %v484 = vmul.f32 %v388, %v388
    %v485 = vmul.f32 %v389, %v389
    %v486 = vmul.f32 %v390, %v390
    %v487 = vmul.f32 %v391, %v391
    %v488 = vmul.f32 %v392, %v392
    %v489 = vmul.f32 %v393, %v393
    %v490 = vmul.f32 %v394, %v394
    %v491 = vmul.f32 %v395, %v395
    %v492 = vmul.f32 %v396, %v396
    %v493 = vmul.f32 %v397, %v397
    %v494 = vmul.f32 %v398, %v398
    %v495 = vmul.f32 %v399, %v399
    %v496 = vmul.f32 %v400, %v400
    %v497 = vmul.f32 %v401, %v401
    %v498 = vmul.f32 %v402, %v402
    %v499 = vmul.f32 %v403, %v403
    %v500 = vadd.f32 %v484, 0.0
    %v501 = vadd.f32 %v485, 0.0
    %v502 = vadd.f32 %v486, 0.0
    %v503 = vadd.f32 %v487, 0.0
    %v504 = vadd.f32 %v488, 0.0
    %v505 = vadd.f32 %v489, 0.0
    %v506 = vadd.f32 %v490, 0.0
    %v507 = vadd.f32 %v491, 0.0
    %v508 = vadd.f32 %v492, 0.0
    %v509 = vadd.f32 %v493, 0.0
    %v510 = vadd.f32 %v494, 0.0
    %v511 = vadd.f32 %v495, 0.0
    %v512 = vadd.f32 %v496, 0.0
    %v513 = vadd.f32 %v497, 0.0
    %v514 = vadd.f32 %v498, 0.0
    %v515 = vadd.f32 %v499, 0.0
    %v516 = vadd.f32 %v468, %v500
    %v517 = vadd.f32 %v469, %v501
    %v518 = vadd.f32 %v470, %v502
    %v519 = vadd.f32 %v471, %v503
    %v520 = vadd.f32 %v472, %v504
    %v521 = vadd.f32 %v473, %v505
    %v522 = vadd.f32 %v474, %v506
    %v523 = vadd.f32 %v475, %v507
    %v524 = vadd.f32 %v476, %v508
    %v525 = vadd.f32 %v477, %v509
    %v526 = vadd.f32 %v478, %v510
    %v527 = vadd.f32 %v479, %v511
    %v528 = vadd.f32 %v480, %v512
    %v529 = vadd.f32 %v481, %v513
    %v530 = vadd.f32 %v482, %v514
    %v531 = vadd.f32 %v483, %v515
    %532 = vst [vmem:[#allocation6] sm:$0xff] %v516
    %533 = vst [vmem:[#allocation6 + $0x8] sm:$0xff] %v517
    %534 = vst [vmem:[#allocation6 + $0x10] sm:$0xff] %v518
    %535 = vst [vmem:[#allocation6 + $0x18] sm:$0xff] %v519
    %536 = vst [vmem:[#allocation6 + $0x20] sm:$0xff] %v520
    %537 = vst [vmem:[#allocation6 + $0x28] sm:$0xff] %v521
    %538 = vst [vmem:[#allocation6 + $0x30] sm:$0xff] %v522
    %539 = vst [vmem:[#allocation6 + $0x38] sm:$0xff] %v523
    %540 = vst [vmem:[#allocation6 + $0x40] sm:$0xff] %v524
    %541 = vst [vmem:[#allocation6 + $0x48] sm:$0xff] %v525
    %542 = vst [vmem:[#allocation6 + $0x50] sm:$0xff] %v526
    %543 = vst [vmem:[#allocation6 + $0x58] sm:$0xff] %v527
    %544 = vst [vmem:[#allocation6 + $0x60] sm:$0xff] %v528
    %545 = vst [vmem:[#allocation6 + $0x68] sm:$0xff] %v529
    %546 = vst [vmem:[#allocation6 + $0x70] sm:$0xff] %v530
    %547 = vst [vmem:[#allocation6 + $0x78] sm:$0xff] %v531
    // Predicated region
    $region14: #{tpu_custom_call.1} parent=1 // pred_check
      _
    $region15: #{tpu_custom_call.1} parent=1 // pred_check_branch
      %549 = sbr.rel (0) target = $region17
    $region16: #{tpu_custom_call.1} parent=1 // pred_region
      %s551 = ssub.s32 2048, 2048
      %552 = vsyncadd [#allocation4], %s551
      %s554 = sshll.u32 [#allocation5], 4
      %s555 = int_to_ptr.vmem [resolvable:$true] %s554
      %557 = dma.vmem_to_hbm [thread:$0]  %s555, 2048, %s1, [#allocation4]
    $region17: #{tpu_custom_call.1} parent=1 // pred_fallthru
      _
    // Predicated region
    $region18: #{tpu_custom_call.1} parent=1 // pred_check
      _
    $region19: #{tpu_custom_call.1} parent=1 // pred_check_branch
      %559 = sbr.rel (0) target = $region21
    $region20: #{tpu_custom_call.1} parent=1 // pred_region
      %s561 = ssub.s32 2048, 2048
      %562 = vsyncadd [#allocation7], %s561
      %s564 = sshll.u32 [#allocation6], 4
      %s565 = int_to_ptr.vmem [resolvable:$true] %s564
      %567 = dma.vmem_to_hbm [thread:$0]  %s565, 2048, %s2, [#allocation7]
    $region21: #{tpu_custom_call.1} parent=1 // pred_fallthru
      _
    // Predicated region
    $region22: #{tpu_custom_call.1} parent=1 // pred_check
      _
    $region23: #{tpu_custom_call.1} parent=1 // pred_check_branch
      %569 = sbr.rel (0) target = $region25
    $region24: #{tpu_custom_call.1} parent=1 // pred_region
      %570 = dma.done [#allocation4], 2048
    $region25: #{tpu_custom_call.1} parent=1 // pred_fallthru
      _
    // Predicated region
    $region26: #{tpu_custom_call.1} parent=1 // pred_check
      _
    $region27: #{tpu_custom_call.1} parent=1 // pred_check_branch
      %572 = sbr.rel (0) target = $region29
    $region28: #{tpu_custom_call.1} parent=1 // pred_region
      %573 = dma.done [#allocation7], 2048
    $region29: #{tpu_custom_call.1} parent=1 // pred_fallthru
      _
    %574 = vsyncpa [#allocation3], 1
    %575 = vsyncpa [#allocation4], 1
    %576 = vsyncpa [#allocation7], 1

</llo_original>
